<compile_context>
chip_gen: v7x
topology: tpu7x:2x2x1
jax: 0.10.0
libtpu: 0.0.40
codegen_flags: <defaults>
</compile_context>

<pallas_src>
import functools

import jax
import jax.numpy as jnp
from jax.experimental import pallas as pl
from jax.experimental.pallas import tpu as pltpu

HIDDEN_SIZE = 48


def _round_up(n, m):
    return -(-n // m) * m


def actor_kernel(x_ref, p_ref, out_ref, *, obs, hidden, n_actions,
                 b1_row, w2_row, b2_row):
    # x_ref: (1, obs) -- only batch row 0 (the only row the module's output uses).
    # p_ref: packed parameter slab; all slices below are static and 8-row aligned.
    x = x_ref[...]                                      # (1, obs)
    w1t = p_ref[0:hidden, 0:obs]                        # (H, obs)  (torch layout)
    b1 = p_ref[b1_row:b1_row + hidden, 0:1]             # (H, 1)
    w2 = p_ref[w2_row:w2_row + hidden, 0:n_actions]     # (H, A)
    b2 = p_ref[b2_row:b2_row + 1, 0:n_actions]          # (1, A)

    # Layer 1 on VPU + XLU lane-reduce: h[j] = sum_k x[k] * w1t[j, k] + b1[j]
    h = jnp.sum(x * w1t, axis=1, keepdims=True) + b1    # (H, 1)
    h = jnp.maximum(h, 0.0)                             # ReLU

    # Layer 2 on VPU + XLU sublane-reduce: logits[a] = sum_j h[j] * w2[j, a] + b2[a]
    logits = jnp.sum(h * w2, axis=0, keepdims=True) + b2  # (1, A)

    # Softmax over the action axis of batch row 0
    # (== torch Softmax(dim=0) applied to the 1-D vector actor_out[0][0]).
    m = jnp.max(logits, axis=-1, keepdims=True)
    e = jnp.exp(logits - m)
    out_ref[...] = e * pl.reciprocal(jnp.sum(e, axis=-1, keepdims=True),
                                     approx=True)


def pack_params(w1t, b1, w2, b2):
    """Pack all Actor params into one f32 slab (done once, reused every call).

    Layout (every section starts at a multiple of 8 rows):
      rows [0, H)           cols [0, obs) : w1t   Linear-1 weight, (H, obs)
      rows [r_b1, r_b1+H)   col  0        : b1    as a column
      rows [r_w2, r_w2+H)   cols [0, A)   : w2    Linear-2 weight^T, (H, A)
      row  r_b2             cols [0, A)   : b2
    """
    hidden, obs = w1t.shape
    n_actions = w2.shape[1]
    width = max(obs, n_actions, 1)
    r_b1 = _round_up(hidden, 8)
    r_w2 = r_b1 + _round_up(hidden, 8)
    r_b2 = r_w2 + _round_up(hidden, 8)
    rows = r_b2 + 8
    p = jnp.zeros((rows, width), jnp.float32)
    p = p.at[0:hidden, 0:obs].set(w1t)
    p = p.at[r_b1:r_b1 + hidden, 0].set(b1)
    p = p.at[r_w2:r_w2 + hidden, 0:n_actions].set(w2)
    p = p.at[r_b2, 0:n_actions].set(b2)
    offsets = dict(b1_row=r_b1, w2_row=r_w2, b2_row=r_b2)
    return p, offsets


@functools.partial(jax.jit, static_argnames=("obs", "hidden", "n_actions",
                                             "b1_row", "w2_row", "b2_row"))
def actor_forward(x, packed, *, obs, hidden, n_actions, b1_row, w2_row, b2_row):
    # Only row 0 of the batch feeds the output (actor_out[0][0]).
    x0 = x[0:1, :].astype(jnp.float32)
    kernel = functools.partial(actor_kernel, obs=obs, hidden=hidden,
                               n_actions=n_actions, b1_row=b1_row,
                               w2_row=w2_row, b2_row=b2_row)
    probs = pl.pallas_call(
        kernel,
        out_shape=jax.ShapeDtypeStruct((1, n_actions), jnp.float32),
        # Gridless, unblocked: one straight-line DMA per operand, no pipelining.
        in_specs=[
            pl.BlockSpec(memory_space=pltpu.MemorySpace.VMEM),
            pl.BlockSpec(memory_space=pltpu.MemorySpace.VMEM),
        ],
        out_specs=pl.BlockSpec(memory_space=pltpu.MemorySpace.VMEM),
    )(x0, packed)
    return probs[0]  # (n_actions,), matches the torch output shape


def init_params(key, obs_size, n_actions):
    # Deterministic PyTorch-Linear-style init: U(-1/sqrt(fan_in), 1/sqrt(fan_in)).
    k1, k2, k3, k4 = jax.random.split(key, 4)
    lim1 = 1.0 / jnp.sqrt(jnp.float32(obs_size))
    lim2 = 1.0 / jnp.sqrt(jnp.float32(HIDDEN_SIZE))
    w1t = jax.random.uniform(k1, (HIDDEN_SIZE, obs_size), jnp.float32, -lim1, lim1)
    b1 = jax.random.uniform(k2, (HIDDEN_SIZE,), jnp.float32, -lim1, lim1)
    w2 = jax.random.uniform(k3, (HIDDEN_SIZE, n_actions), jnp.float32, -lim2, lim2)
    b2 = jax.random.uniform(k4, (n_actions,), jnp.float32, -lim2, lim2)
    return w1t, b1, w2, b2


def actor_forward_ref(x, w1t, b1, w2, b2):
    # Pure-JAX reference of the PyTorch forward (for a sanity check).
    h = jnp.maximum(x[0] @ w1t.T + b1, 0.0)
    logits = h @ w2 + b2
    return jax.nn.softmax(logits, axis=0)


if __name__ == "__main__":
    key = jax.random.PRNGKey(0)
    obs_size = 16    # stand-in for env.observation_space.shape[0] (field1d-v0)
    n_actions = 8    # stand-in for env.action_space.n
    batch = 2        # forward only uses row 0, per actor_out[0][0]

    kx, kp = jax.random.split(key)
    x = jax.random.normal(kx, (batch, obs_size), jnp.float32)
    w1t, b1, w2, b2 = init_params(kp, obs_size, n_actions)

    packed, offs = pack_params(w1t, b1, w2, b2)   # packed ONCE; reused every call
    probs = actor_forward(x, packed, obs=obs_size, hidden=HIDDEN_SIZE,
                          n_actions=n_actions, **offs)
    probs = jax.block_until_ready(probs)

    ref = actor_forward_ref(x, w1t, b1, w2, b2)
    assert probs.shape == (n_actions,)
    # 5e-4 headroom covers the EUP approximate reciprocal (<= ~2^-12 rel error).
    assert jnp.allclose(probs, ref, atol=5e-4, rtol=5e-4)
    assert jnp.allclose(jnp.sum(probs), 1.0, atol=5e-4)

    print("KERNEL_OK")
</pallas_src>

<mosaic_0001>
module attributes {stable_mosaic.version = 11 : i64} {
  func.func @actor_kernel(%arg0: memref<1x16xf32, #tpu.memory_space<vmem>>, %arg1: memref<152x16xf32, #tpu.memory_space<vmem>>, %arg2: memref<1x8xf32, #tpu.memory_space<vmem>>) attributes {dimension_semantics = [], scalar_prefetch = 0 : i64, scratch_operands = 0 : i64, tpu.core_type = #tpu.core_type<tc>} {
    %c0 = arith.constant 0 : index
    %c0_0 = arith.constant 0 : index
    %0 = vector.load %arg0[%c0, %c0_0] : memref<1x16xf32, #tpu.memory_space<vmem>>, vector<1x16xf32>
    %c0_1 = arith.constant 0 : index
    %c0_2 = arith.constant 0 : index
    %1 = vector.load %arg1[%c0_1, %c0_2] : memref<152x16xf32, #tpu.memory_space<vmem>>, vector<48x16xf32>
    %c48 = arith.constant 48 : index
    %c0_3 = arith.constant 0 : index
    %2 = vector.load %arg1[%c48, %c0_3] : memref<152x16xf32, #tpu.memory_space<vmem>>, vector<48x1xf32>
    %c96 = arith.constant 96 : index
    %c0_4 = arith.constant 0 : index
    %3 = vector.load %arg1[%c96, %c0_4] : memref<152x16xf32, #tpu.memory_space<vmem>>, vector<48x8xf32>
    %c144 = arith.constant 144 : index
    %c0_5 = arith.constant 0 : index
    %4 = vector.load %arg1[%c144, %c0_5] : memref<152x16xf32, #tpu.memory_space<vmem>>, vector<1x8xf32>
    %5 = vector.broadcast %0 : vector<1x16xf32> to vector<48x16xf32>
    %6 = arith.mulf %5, %1 : vector<48x16xf32>
    %cst = arith.constant dense<0.000000e+00> : vector<48xf32>
    %7 = vector.multi_reduction <add>, %6, %cst [1] : vector<48x16xf32> to vector<48xf32>
    %8 = vector.shape_cast %7 : vector<48xf32> to vector<48x1xf32>
    %9 = arith.addf %8, %2 : vector<48x1xf32>
    %cst_6 = arith.constant 0.000000e+00 : f32
    %10 = vector.broadcast %cst_6 : f32 to vector<48x1xf32>
    %11 = arith.maximumf %9, %10 : vector<48x1xf32>
    %12 = vector.broadcast %11 : vector<48x1xf32> to vector<48x8xf32>
    %13 = arith.mulf %12, %3 : vector<48x8xf32>
    %cst_7 = arith.constant dense<0.000000e+00> : vector<8xf32>
    %14 = vector.multi_reduction <add>, %13, %cst_7 [0] : vector<48x8xf32> to vector<8xf32>
    %15 = vector.shape_cast %14 : vector<8xf32> to vector<1x8xf32>
    %16 = arith.addf %15, %4 : vector<1x8xf32>
    %cst_8 = arith.constant dense<0xFF800000> : vector<1xf32>
    %17 = vector.multi_reduction <maximumf>, %16, %cst_8 [1] : vector<1x8xf32> to vector<1xf32>
    %18 = vector.shape_cast %17 : vector<1xf32> to vector<1x1xf32>
    %19 = vector.broadcast %18 : vector<1x1xf32> to vector<1x8xf32>
    %20 = arith.subf %16, %19 : vector<1x8xf32>
    %21 = math.exp %20 : vector<1x8xf32>
    %cst_9 = arith.constant dense<0.000000e+00> : vector<1xf32>
    %22 = vector.multi_reduction <add>, %21, %cst_9 [1] : vector<1x8xf32> to vector<1xf32>
    %23 = vector.shape_cast %22 : vector<1xf32> to vector<1x1xf32>
    %24 = tpu.reciprocal %23 {approx = true} : vector<1x1xf32> -> vector<1x1xf32>
    %25 = vector.broadcast %24 : vector<1x1xf32> to vector<1x8xf32>
    %26 = arith.mulf %21, %25 : vector<1x8xf32>
    %c0_10 = arith.constant 0 : index
    %c0_11 = arith.constant 0 : index
    %27 = vector.load %arg2[%c0_10, %c0_11] : memref<1x8xf32, #tpu.memory_space<vmem>>, vector<1x8xf32>
    tpu.vector_store %arg2[%c0_10, %c0_11], %26 {strides = array<i32>} : memref<1x8xf32, #tpu.memory_space<vmem>>, vector<1x8xf32>,
    return
  }
}

</mosaic_0001>

<llo_original>
// kernel: actor_forward.1
$region0: #{actor_forward.1}
  #allocation0 [shape = 'u32[]', space=smem, size = 0x4, offset = 0x4, fixed_abs, tag = 'smem constant byte address 0x4 - core index']
  #allocation1 [shape = 'u32[144,128]{1,0:T(1,128)}', space=vmem, size = 0x12000, scoped, tag = 'internal scratch']
  %s0 = inlined_call_operand.vmem [shape: f32[1,16], index: 0, kind: input, shape index: {}]
  %s1 = inlined_call_operand.vmem [shape: f32[152,16], index: 1, kind: input, shape index: {}]
  %s2 = inlined_call_operand.hbm [shape: f32[1,8], index: 2, kind: output, shape index: {}]
  %s3 = sld [smem:[#allocation0]]
  $region18: #{actor_forward.1} parent=0
    _
  %s5 = ssub.s32 1, %s3
  %s6 = scalar_select 0, %s5, %s3
  $region1: #{actor_forward.1} parent=0
    #allocation2 [shape = 'u8[512]{0}', space=vmem, size = 0x400, scoped, tag = 'output window, operand 0, single buffered']
    #allocation3 [shape = 's32[1]{0}', space=sflag, size = 0x4, scoped, tag = 'scoped memory for actor_forward.1']
    %7 = vsyncpa [#allocation3], 0
    // Predicated region
    $region2: #{actor_forward.1} parent=1 // pred_check
      _
    $region3: #{actor_forward.1} parent=1 // pred_check_branch
      %9 = sbr.rel (0) target = $region5
    $region4: #{actor_forward.1} parent=1 // pred_region
      _
    $region5: #{actor_forward.1} parent=1 // pred_fallthru
      _
    // Predicated region
    $region6: #{actor_forward.1} parent=1 // pred_check
      _
    $region7: #{actor_forward.1} parent=1 // pred_check_branch
      %11 = sbr.rel (0) target = $region9
    $region8: #{actor_forward.1} parent=1 // pred_region
      _
    $region9: #{actor_forward.1} parent=1 // pred_fallthru
      _
    %v12 = vld [vmem:[%s0] sm:$0x1]
    %v13 = vld [vmem:[%s1] sm:$0xff]
    %v14 = vld [vmem:[%s1 + $0x8] sm:$0xff]
    %v15 = vld [vmem:[%s1 + $0x10] sm:$0xff]
    %v16 = vld [vmem:[%s1 + $0x18] sm:$0xff]
    %v17 = vld [vmem:[%s1 + $0x20] sm:$0xff]
    %v18 = vld [vmem:[%s1 + $0x28] sm:$0xff]
    %v19 = vld [vmem:[%s1 + $0x30] sm:$0xff]
    %v20 = vld [vmem:[%s1 + $0x38] sm:$0xff]
    %v21 = vld [vmem:[%s1 + $0x40] sm:$0xff]
    %v22 = vld [vmem:[%s1 + $0x48] sm:$0xff]
    %v23 = vld [vmem:[%s1 + $0x50] sm:$0xff]
    %v24 = vld [vmem:[%s1 + $0x58] sm:$0xff]
    %v25 = vld [vmem:[%s1 + $0x60] sm:$0xff]
    %v26 = vld [vmem:[%s1 + $0x68] sm:$0xff]
    %v27 = vld [vmem:[%s1 + $0x70] sm:$0xff]
    %v28 = vld [vmem:[%s1 + $0x78] sm:$0xff]
    %v29 = vld [vmem:[%s1 + $0x80] sm:$0xff]
    %v30 = vld [vmem:[%s1 + $0x88] sm:$0xff]
    %v31 = vld [vmem:[%s1 + $0x90] sm:$0x1]
    %v33 = vlaneseq
    %v34 = vshrl.u32 %v33, 7
    %v35 = vsub.s32 0, %v34
    %v36 = vrot.slane %v12, %v35
    %v38 = vmul.f32 %v36, %v13
    %v39 = vmul.f32 %v36, %v14
    %v40 = vmul.f32 %v36, %v15
    %v41 = vmul.f32 %v36, %v16
    %v42 = vmul.f32 %v36, %v17
    %v43 = vmul.f32 %v36, %v18
    %vm44 = vcmask 130048
    %v45 = vsel %vm44, %v38, 0.0
    %46 = vadd.xlane.f32.xlu0 %v45
    %v47 = vpop.xlane.xlu0 %46
    %v48 = vsel %vm44, %v39, 0.0
    %49 = vadd.xlane.f32.xlu0 %v48
    %v50 = vpop.xlane.xlu0 %49
    %v51 = vsel %vm44, %v40, 0.0
    %52 = vadd.xlane.f32.xlu0 %v51
    %v53 = vpop.xlane.xlu0 %52
    %v54 = vsel %vm44, %v41, 0.0
    %55 = vadd.xlane.f32.xlu0 %v54
    %v56 = vpop.xlane.xlu0 %55
    %v57 = vsel %vm44, %v42, 0.0
    %58 = vadd.xlane.f32.xlu0 %v57
    %v59 = vpop.xlane.xlu0 %58
    %v60 = vsel %vm44, %v43, 0.0
    %61 = vadd.xlane.f32.xlu0 %v60
    %v62 = vpop.xlane.xlu0 %61
    %v63 = vadd.f32 %v47, %v19
    %v64 = vadd.f32 %v50, %v20
    %v65 = vadd.f32 %v53, %v21
    %v66 = vadd.f32 %v56, %v22
    %v67 = vadd.f32 %v59, %v23
    %v68 = vadd.f32 %v62, %v24
    %v69 = vmax.f32 %v63, 0.0
    %v70 = vmax.f32 %v64, 0.0
    %v71 = vmax.f32 %v65, 0.0
    %v72 = vmax.f32 %v66, 0.0
    %v73 = vmax.f32 %v67, 0.0
    %v74 = vmax.f32 %v68, 0.0
    %76 = vset.pattern.permute.xlu0 0
    %77 = vperm.xlu0 %76, %v69
    %v78 = vpop.permute.xlu0 %77
    %81 = vset.pattern.permute.xlu0 0
    %82 = vperm.xlu0 %81, %v70
    %v83 = vpop.permute.xlu0 %82
    %86 = vset.pattern.permute.xlu0 0
    %87 = vperm.xlu0 %86, %v71
    %v88 = vpop.permute.xlu0 %87
    %91 = vset.pattern.permute.xlu0 0
    %92 = vperm.xlu0 %91, %v72
    %v93 = vpop.permute.xlu0 %92
    %96 = vset.pattern.permute.xlu0 0
    %97 = vperm.xlu0 %96, %v73
    %v98 = vpop.permute.xlu0 %97
    %101 = vset.pattern.permute.xlu0 0
    %102 = vperm.xlu0 %101, %v74
    %v103 = vpop.permute.xlu0 %102
    %v105 = vmul.f32 %v78, %v25
    %v106 = vmul.f32 %v83, %v26
    %v107 = vmul.f32 %v88, %v27
    %v108 = vmul.f32 %v93, %v28
    %v109 = vmul.f32 %v98, %v29
    %v110 = vmul.f32 %v103, %v30
    %vm111 = vcmask 64512
    %v112 = vsel %vm111, %v105, 0.0
    %v113 = vsel %vm111, %v106, 0.0
    %v114 = vadd.f32 %v112, %v113
    %v115 = vsel %vm111, %v107, 0.0
    %v116 = vadd.f32 %v114, %v115
    %v117 = vsel %vm111, %v108, 0.0
    %v118 = vadd.f32 %v116, %v117
    %v119 = vsel %vm111, %v109, 0.0
    %v120 = vadd.f32 %v118, %v119
    %v121 = vsel %vm111, %v110, 0.0
    %v122 = vadd.f32 %v120, %v121
    %v123 = vrot.slane %v122, 4
    %v124 = vadd.f32 %v122, %v123
    %v125 = vrot.slane %v124, 2
    %v126 = vadd.f32 %v124, %v125
    %v127 = vrot.slane %v126, 1
    %v128 = vadd.f32 %v126, %v127
    %v129 = vadd.f32 %v128, %v31
    %vm130 = vcmask 57344
    %v131 = vsel %vm130, %v129, -inf
    %132 = vmax.xlane.f32.xlu0 %v131
    %v133 = vpop.xlane.xlu0 %132
    %v134 = vsub.f32 %v129, %v133
    %v135 = vmul.f32 %v134, 1.442695
    %v136 = vpow.pop %v135
    %v137 = vsel %vm130, %v136, 0.0
    %138 = vadd.xlane.f32.xlu0 %v137
    %v139 = vpop.xlane.xlu0 %138
    %v140 = vrcp.pop %v139
    %v141 = vmul.f32 %v136, %v140
    %142 = vst.msk [vmem:[#allocation2] sm:$0x1] %vm130, %v141
    // Predicated region
    $region10: #{actor_forward.1} parent=1 // pred_check
      _
    $region11: #{actor_forward.1} parent=1 // pred_check_branch
      %144 = sbr.rel (0) target = $region13
    $region12: #{actor_forward.1} parent=1 // pred_region
      %s146 = ssub.s32 16, 16
      %147 = vsyncadd [#allocation3], %s146
      %s149 = sshll.u32 [#allocation2], 4
      %s150 = int_to_ptr.vmem [resolvable:$true] %s149
      %152 = dma.vmem_to_hbm [thread:$0]  %s150, 16, %s2, [#allocation3]
    $region13: #{actor_forward.1} parent=1 // pred_fallthru
      _
    // Predicated region
    $region14: #{actor_forward.1} parent=1 // pred_check
      _
    $region15: #{actor_forward.1} parent=1 // pred_check_branch
      %154 = sbr.rel (0) target = $region17
    $region16: #{actor_forward.1} parent=1 // pred_region
      %155 = dma.done [#allocation3], 16
    $region17: #{actor_forward.1} parent=1 // pred_fallthru
      _
    %156 = vsyncpa [#allocation3], 1

</llo_original>
